<compile_context>
chip_gen: v5e
topology: v5e:2x2
jax: 0.10.0
libtpu: 0.0.40
codegen_flags: <defaults>
</compile_context>

<pallas_src>
import functools

import jax
import jax.numpy as jnp
from jax.experimental import pallas as pl
from jax.experimental.pallas import tpu as pltpu


# ----------------------------- pure-JAX references -------------------------
def _unsqueeze2d_ref(x, factor, factor2):
    if factor == 1 and factor2 == 1:
        return x
    B, C, H, W = x.shape
    c2 = C // (factor * factor2)
    y = x.reshape(B, c2, factor, factor2, H, W)
    y = jnp.transpose(y, (0, 1, 4, 2, 5, 3))
    return y.reshape(B, c2, H * factor, W * factor2)


def _squeeze2d_ref(x, factor, factor2):
    if factor == 1:
        return x
    B, C, H, W = x.shape
    y = x.reshape(B, C, H // factor, factor, W // factor2, factor2)
    y = jnp.transpose(y, (0, 1, 3, 5, 2, 4))
    return y.reshape(B, C * factor * factor2, H // factor, W // factor2)


# ------------------------------ tile selection ------------------------------
# ~2 MiB per block: (in + out) x 2 pipeline buffers ~= 8 MiB in flight, which
# leaves headroom under v5e's 16 MiB default scoped VMEM and v7x's 32 MiB.
_TARGET_BLOCK_BYTES = 2 * 1024 * 1024


def _pick_chan_tile(n_chan, per_chan_bytes, budget=_TARGET_BLOCK_BYTES):
    """Largest divisor of n_chan whose block stays under the VMEM budget."""
    cap = max(1, budget // max(per_chan_bytes, 1))
    cap = min(cap, n_chan)
    for d in range(cap, 0, -1):
        if n_chan % d == 0:
            return d
    return 1


def _pick_rows_tile(n_rows, per_row_bytes, budget=_TARGET_BLOCK_BYTES):
    """Row (sublane) tile: divisor of n_rows, multiple of 8, or the full extent."""
    if n_rows * per_row_bytes <= budget:
        return n_rows
    cap = min(max(1, budget // max(per_row_bytes, 1)), n_rows)
    for d in range(cap, 0, -1):
        if n_rows % d == 0 and d % 8 == 0:
            return d
    return n_rows  # fallback: full rows (may exceed budget, still correct)


def _pick_tiles_dense(n_chan, n_rows, w, itemsize):
    per_row = w * itemsize
    per_chan = n_rows * per_row
    tc = _pick_chan_tile(n_chan, per_chan)
    if tc == 1 and per_chan > _TARGET_BLOCK_BYTES:
        th = _pick_rows_tile(n_rows, per_row)
    else:
        th = n_rows
    return tc, th


# --------------------------------- kernels ---------------------------------
def _copy_kernel(x_ref, o_ref):
    # Lane-dense path: the channel<->row interleave lives entirely in the
    # BlockSpec index_maps; the body is a straight block copy.
    o_ref[...] = x_ref[...]


def _unsqueeze_kernel(x_ref, o_ref, *, factor):
    # x_ref: (TC, factor, H, W)    o_ref: (TC, H, factor*W)
    # out[c, h, i*W + w] = x[c, i, h, w]
    W = x_ref.shape[-1]
    for i in range(factor):                                   # static unroll
        o_ref[:, :, i * W:(i + 1) * W] = x_ref[:, i, :, :]    # per-slab stores


def _squeeze_kernel(x_ref, o_ref, *, factor):
    # x_ref: (TC, H//factor, factor*W)   o_ref: (TC, factor, H//factor, W)
    # o[c, i, h, w] = x[c, h, i*W + w]
    W = o_ref.shape[-1]
    for i in range(factor):                                   # static unroll
        o_ref[:, i, :, :] = x_ref[:, :, i * W:(i + 1) * W]


# --------------------------------- wrappers --------------------------------
def unsqueeze2d(x, factor=2, factor2=1):
    assert factor >= 1 and isinstance(factor, int)
    if factor == 1 and factor2 == 1:
        return x
    if factor2 != 1:
        # TODO(synk): factor2 > 1 requires a sub-W lane interleave; rare config,
        # fall back to plain JAX.
        assert x.shape[1] % (factor * factor2) == 0, (x.shape[1], factor, factor2)
        return _unsqueeze2d_ref(x, factor, factor2)

    B, C, H, W = x.shape
    assert C % factor == 0, (C, factor)
    cout = C // factor
    itemsize = jnp.dtype(x.dtype).itemsize

    if W % 128 == 0:
        # Pure-DMA path: grid over (batch, channel tile, H tile, factor);
        # every block's last two dims are (TH, W) -> dense, unmasked stores.
        tc, th = _pick_tiles_dense(cout, H, W, itemsize)
        x5 = x.reshape(B, cout, factor, H, W)                 # contiguous view
        out = pl.pallas_call(
            _copy_kernel,
            out_shape=jax.ShapeDtypeStruct((B, cout, H, factor * W), x.dtype),
            grid=(B, cout // tc, H // th, factor),
            in_specs=[pl.BlockSpec((None, tc, None, th, W),
                                   lambda b, c, h, i: (b, c, i, h, 0))],
            out_specs=pl.BlockSpec((None, tc, th, W),
                                   lambda b, c, h, i: (b, c, h, i)),
            compiler_params=pltpu.CompilerParams(
                dimension_semantics=("parallel",) * 4),
        )(x5)
        # (B, cout, H, factor*W) is row-major identical to (B, cout, H*factor, W).
        return out.reshape(B, cout, H * factor, W)

    # General (small-W) path: channel-tiled, interleave via static lane slabs.
    # TODO(synk): if a single channel slab (factor*H*W) ever exceeds the VMEM
    # budget at W < 128, an H-tile would be needed here too.
    tc = _pick_chan_tile(cout, factor * H * W * itemsize)
    x5 = x.reshape(B, cout, factor, H, W)                     # contiguous view
    out = pl.pallas_call(
        functools.partial(_unsqueeze_kernel, factor=factor),
        out_shape=jax.ShapeDtypeStruct((B, cout, H, factor * W), x.dtype),
        grid=(B, cout // tc),
        in_specs=[pl.BlockSpec((None, tc, factor, H, W),
                               lambda b, c: (b, c, 0, 0, 0))],
        out_specs=pl.BlockSpec((None, tc, H, factor * W),
                               lambda b, c: (b, c, 0, 0)),
        compiler_params=pltpu.CompilerParams(
            dimension_semantics=("parallel", "parallel")),
    )(x5)
    return out.reshape(B, cout, H * factor, W)


def squeeze2d(x, factor=2, factor2=1):
    assert factor >= 1 and isinstance(factor, int)
    if factor == 1:                      # mirrors the reference (ignores factor2)
        return x
    if factor2 != 1:
        # TODO(synk): factor2 > 1 falls back to plain JAX (see unsqueeze2d).
        assert x.shape[2] % factor == 0 and x.shape[3] % factor2 == 0
        return _squeeze2d_ref(x, factor, factor2)

    B, C, H, W = x.shape
    assert H % factor == 0, (H, factor)
    Hf = H // factor
    itemsize = jnp.dtype(x.dtype).itemsize

    if W % 128 == 0:
        # Pure-DMA path: mirror of unsqueeze.
        tc, th = _pick_tiles_dense(C, Hf, W, itemsize)
        x4 = x.reshape(B, C, Hf, factor * W)                  # contiguous view
        out = pl.pallas_call(
            _copy_kernel,
            out_shape=jax.ShapeDtypeStruct((B, C, factor, Hf, W), x.dtype),
            grid=(B, C // tc, Hf // th, factor),
            in_specs=[pl.BlockSpec((None, tc, th, W),
                                   lambda b, c, h, i: (b, c, h, i))],
            out_specs=pl.BlockSpec((None, tc, None, th, W),
                                   lambda b, c, h, i: (b, c, i, h, 0)),
            compiler_params=pltpu.CompilerParams(
                dimension_semantics=("parallel",) * 4),
        )(x4)
        # (B, C, factor, Hf, W) is row-major identical to (B, C*factor, Hf, W).
        return out.reshape(B, C * factor, Hf, W)

    # General (small-W) path.
    tc = _pick_chan_tile(C, factor * Hf * W * itemsize)
    x4 = x.reshape(B, C, Hf, factor * W)                      # contiguous view
    out = pl.pallas_call(
        functools.partial(_squeeze_kernel, factor=factor),
        out_shape=jax.ShapeDtypeStruct((B, C, factor, Hf, W), x.dtype),
        grid=(B, C // tc),
        in_specs=[pl.BlockSpec((None, tc, Hf, factor * W),
                               lambda b, c: (b, c, 0, 0))],
        out_specs=pl.BlockSpec((None, tc, factor, Hf, W),
                               lambda b, c: (b, c, 0, 0, 0)),
        compiler_params=pltpu.CompilerParams(
            dimension_semantics=("parallel", "parallel")),
    )(x4)
    return out.reshape(B, C * factor, Hf, W)


class UnSqueezeLayer:
    """JAX/Pallas equivalent of the PyTorch UnSqueezeLayer module."""

    def __init__(self, factor, factor2):
        self.factor = factor
        self.factor2 = factor2

    def forward(self, input, logdet=None, reverse=False):
        if not reverse:
            return unsqueeze2d(input, self.factor, self.factor2), logdet
        else:
            return squeeze2d(input, self.factor, self.factor2), logdet

    __call__ = forward


# --------------------------------- driver ----------------------------------
if __name__ == "__main__":
    key = jax.random.PRNGKey(0)
    k1, k2 = jax.random.split(key)

    layer = UnSqueezeLayer(factor=2, factor2=1)

    # ---- small-W shapes (general path, in-kernel slab interleave) ----
    x = jax.random.normal(k1, (2, 4, 16, 16), dtype=jnp.float32)
    out, logdet = layer.forward(x, logdet=None, reverse=False)   # unsqueeze2d
    out = jax.block_until_ready(out)
    assert out.shape == (2, 2, 32, 16), out.shape
    assert logdet is None
    assert bool(jnp.array_equal(out, _unsqueeze2d_ref(x, 2, 1))), "fwd mismatch"

    back, _ = layer.forward(out, logdet=None, reverse=True)      # squeeze2d
    back = jax.block_until_ready(back)
    assert back.shape == x.shape, back.shape
    assert bool(jnp.array_equal(back, _squeeze2d_ref(out, 2, 1))), "rev mismatch"
    assert bool(jnp.array_equal(back, x)), "round-trip mismatch"

    # ---- lane-dense shapes (pure-DMA path, W % 128 == 0) ----
    x2 = jax.random.normal(k2, (1, 4, 16, 128), dtype=jnp.float32)
    out2, _ = layer.forward(x2, logdet=None, reverse=False)
    out2 = jax.block_until_ready(out2)
    assert out2.shape == (1, 2, 32, 128), out2.shape
    assert bool(jnp.array_equal(out2, _unsqueeze2d_ref(x2, 2, 1))), "fwd dense mismatch"

    back2, _ = layer.forward(out2, logdet=None, reverse=True)
    back2 = jax.block_until_ready(back2)
    assert back2.shape == x2.shape, back2.shape
    assert bool(jnp.array_equal(back2, _squeeze2d_ref(out2, 2, 1))), "rev dense mismatch"
    assert bool(jnp.array_equal(back2, x2)), "dense round-trip mismatch"

    print("KERNEL_OK")
</pallas_src>

<mosaic_0001>
module attributes {stable_mosaic.version = 11 : i64} {
  func.func @_unsqueeze_kernel(%arg0: i32, %arg1: i32, %arg2: memref<1x2x2x16x16xf32, #tpu.memory_space<vmem>>, %arg3: memref<1x2x16x32xf32, #tpu.memory_space<vmem>>) attributes {dimension_semantics = [#tpu.dimension_semantics<parallel>, #tpu.dimension_semantics<parallel>], iteration_bounds = array<i64: 2, 1>, scalar_prefetch = 0 : i64, scratch_operands = 0 : i64, tpu.core_type = #tpu.core_type<tc>, window_params = [{transform_indices = @transform_0, window_bounds = array<i64: 1, 2, 2, 16, 16>}, {transform_indices = @transform_1, window_bounds = array<i64: 1, 2, 16, 32>}]} {
    %c0 = arith.constant 0 : index
    %c0_0 = arith.constant 0 : index
    %c0_1 = arith.constant 0 : index
    %c0_2 = arith.constant 0 : index
    %c0_3 = arith.constant 0 : index
    %0 = vector.load %arg2[%c0, %c0_0, %c0_1, %c0_2, %c0_3] : memref<1x2x2x16x16xf32, #tpu.memory_space<vmem>>, vector<1x2x1x16x16xf32>
    %1 = vector.shape_cast %0 : vector<1x2x1x16x16xf32> to vector<2x16x16xf32>
    %c0_4 = arith.constant 0 : index
    %c0_5 = arith.constant 0 : index
    %c0_6 = arith.constant 0 : index
    %c0_7 = arith.constant 0 : index
    %2 = vector.load %arg3[%c0_4, %c0_5, %c0_6, %c0_7] : memref<1x2x16x32xf32, #tpu.memory_space<vmem>>, vector<1x2x16x16xf32>
    %3 = vector.shape_cast %2 : vector<1x2x16x16xf32> to vector<2x16x16xf32>
    %4 = vector.shape_cast %1 : vector<2x16x16xf32> to vector<1x2x16x16xf32>
    tpu.vector_store %arg3[%c0_4, %c0_5, %c0_6, %c0_7], %4 {strides = array<i32>} : memref<1x2x16x32xf32, #tpu.memory_space<vmem>>, vector<1x2x16x16xf32>,
    %c0_8 = arith.constant 0 : index
    %c0_9 = arith.constant 0 : index
    %c1 = arith.constant 1 : index
    %c0_10 = arith.constant 0 : index
    %c0_11 = arith.constant 0 : index
    %5 = vector.load %arg2[%c0_8, %c0_9, %c1, %c0_10, %c0_11] : memref<1x2x2x16x16xf32, #tpu.memory_space<vmem>>, vector<1x2x1x16x16xf32>
    %6 = vector.shape_cast %5 : vector<1x2x1x16x16xf32> to vector<2x16x16xf32>
    %c0_12 = arith.constant 0 : index
    %c0_13 = arith.constant 0 : index
    %c0_14 = arith.constant 0 : index
    %c16 = arith.constant 16 : index
    %7 = vector.load %arg3[%c0_12, %c0_13, %c0_14, %c16] : memref<1x2x16x32xf32, #tpu.memory_space<vmem>>, vector<1x2x16x16xf32>
    %8 = vector.shape_cast %7 : vector<1x2x16x16xf32> to vector<2x16x16xf32>
    %9 = vector.shape_cast %6 : vector<2x16x16xf32> to vector<1x2x16x16xf32>
    tpu.vector_store %arg3[%c0_12, %c0_13, %c0_14, %c16], %9 {strides = array<i32>} : memref<1x2x16x32xf32, #tpu.memory_space<vmem>>, vector<1x2x16x16xf32>,
    return
  }
  func.func @transform_0(%arg0: i32, %arg1: i32) -> (i32, i32, i32, i32, i32) {
    %c0_i32 = arith.constant 0 : i32
    %c0_i32_0 = arith.constant 0 : i32
    %c0_i32_1 = arith.constant 0 : i32
    %c0_i32_2 = arith.constant 0 : i32
    return %arg0, %arg1, %c0_i32, %c0_i32_0, %c0_i32_1 : i32, i32, i32, i32, i32
  }
  func.func @transform_1(%arg0: i32, %arg1: i32) -> (i32, i32, i32, i32) {
    %c0_i32 = arith.constant 0 : i32
    %c0_i32_0 = arith.constant 0 : i32
    %c0_i32_1 = arith.constant 0 : i32
    return %arg0, %arg1, %c0_i32, %c0_i32_0 : i32, i32, i32, i32
  }
}

</mosaic_0001>

<llo_original>
// kernel: tpu_custom_call.1
$region0: #{tpu_custom_call.1}
  #allocation0 [shape = 'u32[]', space=smem, size = 0x4, offset = 0x4, fixed_abs, tag = 'smem constant byte address 0x4 - core index']
  #allocation1 [shape = 'u32[72,128]{1,0:T(1,128)}', space=vmem, size = 0x9000, scoped, tag = 'internal scratch']
  %s0 = inlined_call_operand.hbm [shape: f32[2,2,2,16,16], index: 0, kind: input, shape index: {}]
  %s1 = inlined_call_operand.hbm [shape: f32[2,2,16,32], index: 1, kind: output, shape index: {}]
  %s2 = sld [smem:[#allocation0]]
  $region41: #{tpu_custom_call.1} parent=0
    _
  %s4 = ssub.s32 1, %s2
  %s5 = scalar_select 0, %s4, %s2
  $region1: #{tpu_custom_call.1} parent=0
    #allocation2 [shape = 'u8[65536]{0}', space=vmem, size = 0x10000, scoped, tag = 'input window, operand 0']
    #allocation3 [shape = 's32[2]{0}', space=sflag, size = 0x8, scoped, tag = 'scoped memory for tpu_custom_call.1']
    #allocation4 [shape = 's32[2]{0}', space=sflag, size = 0x8, scoped, tag = 'scoped memory for tpu_custom_call.1']
    #allocation5 [shape = 'u8[32768]{0}', space=vmem, size = 0x8000, scoped, tag = 'output window, operand 0']
    %6 = vsyncpa [#allocation3], 0
    %s7 = scalar_lea.sflag [#allocation3], 1
    %8 = vsyncpa %s7, 0
    %9 = vsyncpa [#allocation4], 0
    %s10 = scalar_lea.sflag [#allocation4], 1
    %11 = vsyncpa %s10, 0
    loop: start=0, step=1, limit=4
    $region2: #{tpu_custom_call.1} parent=1 // loop_pre_header
      _
    $region3: #{tpu_custom_call.1} parent=1 // loop_header
      %s13 = sphi 0, %s17
      %p14 = scmp.ge.s32.totalorder %s13, 4
      %s20 = sphi 0, %s32
      %s21 = sphi 0, %s28
      %s22 = sphi 0, %s20
      %s23 = sphi 0, %s21
      %s24 = sphi 0, %s22
      %s25 = sphi 0, %s23
      %s37 = sphi 0, %s39
      %s40 = sphi 0, %s37
      %s41 = sphi 0, %s40
      %s57 = sphi 0, %s41
      %s65 = sphi 0, %s67
      %s68 = sphi 0, %s65
      %s69 = sphi 0, %s68
      %s85 = sphi 0, %s69
    $region4: #{tpu_custom_call.1} parent=1 // loop_header_branch
      %16 = sbr.rel (%p14) target = $region8
    $region5: #{tpu_custom_call.1} parent=1 // loop_body
      %s18 = ssub.s32 %s13, 1
      %s19 = ssub.s32 %s13, 2
      %s26 = sadd.s32 1, %s21
      %p27 = scmp.ge.s32.totalorder %s26, 1
      %s28 = scalar_select %p27, 0, %s26
      %s29 = sadd.s32 1, %s20
      %s30 = scalar_select %p27, %s29, %s20
      %p31 = scmp.ge.s32.totalorder %s30, 2
      %s32 = scalar_select %p31, 0, %s30
      %s33 = ssub.s32 %s20, %s32
      %s34 = ssub.s32 %s21, %s28
      %s35 = sor.u32 %s33, %s34
      %p36 = scmp.eq.s32.totalorder %s35, 0
      %s38 = sadd.s32 %s37, 1
      %s39 = scalar_select %p36, %s37, %s38
      %p42 = pneg %p36
      %p43 = scmp.eq.s32.totalorder %s13, 1
      %p44 = por %p42, %p43
      %p45 = scmp.ne.s32.totalorder %s37, %s40
      %p46 = scmp.eq.s32.totalorder %s13, 0
      %p47 = por %p45, %p46
      %p48 = scmp.ne.s32.totalorder %s37, %s40
      %p49 = scmp.eq.s32.totalorder %s18, 1
      %p50 = por %p48, %p49
      %p51 = scmp.ne.s32.totalorder %s40, %s41
      %p52 = scmp.eq.s32.totalorder %s18, 0
      %p53 = por %p51, %p52
      %p54 = scmp.ne.s32.totalorder %s40, %s41
      %p55 = scmp.eq.s32.totalorder %s19, 1
      %p56 = por %p54, %p55
      %p58 = scmp.ne.s32.totalorder %s41, %s57
      %p59 = scmp.eq.s32.totalorder %s19, 0
      %p60 = por %p58, %p59
      %s61 = ssub.s32 %s20, %s32
      %s62 = ssub.s32 %s21, %s28
      %s63 = sor.u32 %s61, %s62
      %p64 = scmp.eq.s32.totalorder %s63, 0
      %s66 = sadd.s32 %s65, 1
      %s67 = scalar_select %p64, %s65, %s66
      %p70 = pneg %p64
      %p71 = scmp.eq.s32.totalorder %s13, 1
      %p72 = por %p70, %p71
      %p73 = scmp.ne.s32.totalorder %s65, %s68
      %p74 = scmp.eq.s32.totalorder %s13, 0
      %p75 = por %p73, %p74
      %p76 = scmp.ne.s32.totalorder %s65, %s68
      %p77 = scmp.eq.s32.totalorder %s18, 1
      %p78 = por %p76, %p77
      %p79 = scmp.ne.s32.totalorder %s68, %s69
      %p80 = scmp.eq.s32.totalorder %s18, 0
      %p81 = por %p79, %p80
      %p82 = scmp.ne.s32.totalorder %s68, %s69
      %p83 = scmp.eq.s32.totalorder %s19, 1
      %p84 = por %p82, %p83
      %p86 = scmp.ne.s32.totalorder %s69, %s85
      %p87 = scmp.eq.s32.totalorder %s19, 0
      %p88 = por %p86, %p87
      %p89 = scmp.le.s32.totalorder 1, %s13
      %p90 = scmp.lt.s32.totalorder %s13, 3
      %p91 = pnand %p89, %p90
      %p92 = pneg %p91
      // Predicated region
      $region9: #{tpu_custom_call.1} parent=5 // pred_check
        _
      $region10: #{tpu_custom_call.1} parent=5 // pred_check_branch
        %94 = sbr.rel (%p91) target = $region12
      $region11: #{tpu_custom_call.1} parent=5 // pred_region
        %s95 = ssub.s32 %s13, 1
      $region12: #{tpu_custom_call.1} parent=5 // pred_fallthru
        _
      %p96 = scmp.lt.s32.totalorder %s13, 2
      // Predicated region
      $region13: #{tpu_custom_call.1} parent=5 // pred_check
        %p97 = pneg %p96
      $region14: #{tpu_custom_call.1} parent=5 // pred_check_branch
        %99 = sbr.rel (%p97) target = $region16
      $region15: #{tpu_custom_call.1} parent=5 // pred_region
        // Predicated region
        $region17: #{tpu_custom_call.1} parent=15 // pred_check
          %p100 = pneg %p47
        $region18: #{tpu_custom_call.1} parent=15 // pred_check_branch
          %102 = sbr.rel (%p100) target = $region20
        $region19: #{tpu_custom_call.1} parent=15 // pred_region
          %s103 = sand.u32 %s37, 1
          %s104 = scalar_lea.sflag [#allocation3], %s103
          %s105 = sand.u32 %s37, 1
          %s106 = smul.addr %s105, 64
          %s107 = scalar_lea.vmem [#allocation2], %s106
          %s108 = smul.u32 2, %s21
          %110 = vsyncadd %s104, 0
          %s111 = smul.addr %s108, 4
          %s112 = smul.addr %s20, 8
          %s113 = sadd.s32 %s111, %s112
          %s114 = smul.addr %s113, 8
          %s115 = scalar_lea.hbm %s0, %s114
          %s116 = sshll.u32 %s115, 4
          %s117 = int_to_ptr.hbm [resolvable:$true] %s116
          %s118 = sshll.u32 %s107, 4
          %s119 = int_to_ptr.vmem [resolvable:$true] %s118
          %124 = dma.hbm_to_vmem [thread:$0]  %s117, 1024, %s119, %s104, 128, 128, 8
        $region20: #{tpu_custom_call.1} parent=15 // pred_fallthru
          _
      $region16: #{tpu_custom_call.1} parent=5 // pred_fallthru
        _
      %p125 = scmp.le.s32.totalorder 1, %s13
      %p126 = scmp.lt.s32.totalorder %s13, 3
      %p127 = pnand %p125, %p126
      %p128 = pneg %p127
      // Predicated region
      $region21: #{tpu_custom_call.1} parent=5 // pred_check
        _
      $region22: #{tpu_custom_call.1} parent=5 // pred_check_branch
        %130 = sbr.rel (%p127) target = $region24
      $region23: #{tpu_custom_call.1} parent=5 // pred_region
        %s131 = ssub.s32 %s13, 1
        %s132 = sand.u32 %s40, 1
        %s133 = scalar_lea.sflag [#allocation3], %s132
        %s134 = sand.u32 %s40, 1
        %s135 = smul.addr %s134, 64
        %s136 = scalar_lea.vmem [#allocation2], %s135
        // Predicated region
        $region25: #{tpu_custom_call.1} parent=23 // pred_check
          %p137 = pneg %p53
        $region26: #{tpu_custom_call.1} parent=23 // pred_check_branch
          %139 = sbr.rel (%p137) target = $region28
        $region27: #{tpu_custom_call.1} parent=23 // pred_region
          %141 = dma.done %s133, 1024
        $region28: #{tpu_custom_call.1} parent=23 // pred_fallthru
          _
        %s142 = sand.u32 %s40, 1
        %s143 = scalar_lea.sflag [#allocation3], %s142
        %s144 = sand.u32 %s40, 1
        %s145 = smul.addr %s144, 64
        %s146 = scalar_lea.vmem [#allocation2], %s145
        %p147 = pneg %p53
        %p148 = pneg %p50
        %p149 = pneg %p81
        %p150 = pneg %p78
        %s151 = sand.u32 %s68, 1
        %s152 = scalar_lea.sflag [#allocation4], %s151
        %s153 = sand.u32 %s68, 1
        %s154 = smul.addr %s153, 32
        %s155 = scalar_lea.vmem [#allocation5], %s154
        %s156 = smul.u32 2, %s23
        %s157 = smul.u32 2, %s23
        %v158 = vld [vmem:[%s136] sm:$0xff]
        %v159 = vld [vmem:[%s136 + $0x8] sm:$0xff]
        %v160 = vld [vmem:[%s136 + $0x20] sm:$0xff]
        %v161 = vld [vmem:[%s136 + $0x28] sm:$0xff]
        %vm162 = vcmask 130048
        %163 = vst.msk [vmem:[%s155] sm:$0xff] %vm162, %v158
        %164 = vst.msk [vmem:[%s155 + $0x8] sm:$0xff] %vm162, %v159
        %165 = vst.msk [vmem:[%s155 + $0x10] sm:$0xff] %vm162, %v160
        %166 = vst.msk [vmem:[%s155 + $0x18] sm:$0xff] %vm162, %v161
        %s167 = scalar_lea.vmem %s136, 16 [#allocation2]
        %v168 = vld [vmem:[%s167] sm:$0xff]
        %v169 = vld [vmem:[%s167 + $0x8] sm:$0xff]
        %v170 = vld [vmem:[%s167 + $0x20] sm:$0xff]
        %v171 = vld [vmem:[%s167 + $0x28] sm:$0xff]
        %176 = vrot.lane.b32.xlu0 %v168, 16
        %v177 = vpop.permute.xlu0 %176
        %178 = vrot.lane.b32.xlu0 %v169, 16
        %v179 = vpop.permute.xlu0 %178
        %180 = vrot.lane.b32.xlu0 %v170, 16
        %v181 = vpop.permute.xlu0 %180
        %182 = vrot.lane.b32.xlu0 %v171, 16
        %v183 = vpop.permute.xlu0 %182
        %vm188 = vcmask 261248
        %189 = vst.msk [vmem:[%s155] sm:$0xff] %vm188, %v177
        %190 = vst.msk [vmem:[%s155 + $0x8] sm:$0xff] %vm188, %v179
        %191 = vst.msk [vmem:[%s155 + $0x10] sm:$0xff] %vm188, %v181
        %192 = vst.msk [vmem:[%s155 + $0x18] sm:$0xff] %vm188, %v183
        %s193 = sand.u32 %s68, 1
        %s194 = scalar_lea.sflag [#allocation4], %s193
        %s195 = sand.u32 %s68, 1
        %s196 = smul.addr %s195, 32
        %s197 = scalar_lea.vmem [#allocation5], %s196
        // Predicated region
        $region29: #{tpu_custom_call.1} parent=23 // pred_check
          %p198 = pneg %p78
        $region30: #{tpu_custom_call.1} parent=23 // pred_check_branch
          %200 = sbr.rel (%p198) target = $region32
        $region31: #{tpu_custom_call.1} parent=23 // pred_region
          %s201 = smul.u32 2, %s23
          %203 = vsyncadd %s194, 0
          %s204 = smul.addr %s201, 2
          %s205 = smul.addr %s22, 4
          %s206 = sadd.s32 %s204, %s205
          %s207 = smul.addr %s206, 8
          %s208 = scalar_lea.hbm %s1, %s207
          %s209 = sshll.u32 %s197, 4
          %s210 = int_to_ptr.vmem [resolvable:$true] %s209
          %s211 = sshll.u32 %s208, 4
          %s212 = int_to_ptr.hbm [resolvable:$true] %s211
          %217 = dma.vmem_to_hbm [thread:$0]  %s210, 512, %s212, %s194, 128, 128, 8
        $region32: #{tpu_custom_call.1} parent=23 // pred_fallthru
          _
      $region24: #{tpu_custom_call.1} parent=5 // pred_fallthru
        _
      %p218 = scmp.le.s32.totalorder 2, %s13
      // Predicated region
      $region33: #{tpu_custom_call.1} parent=5 // pred_check
        %p219 = pneg %p218
      $region34: #{tpu_custom_call.1} parent=5 // pred_check_branch
        %221 = sbr.rel (%p219) target = $region36
      $region35: #{tpu_custom_call.1} parent=5 // pred_region
        %s222 = ssub.s32 %s13, 2
        // Predicated region
        $region37: #{tpu_custom_call.1} parent=35 // pred_check
          %p223 = pneg %p84
        $region38: #{tpu_custom_call.1} parent=35 // pred_check_branch
          %225 = sbr.rel (%p223) target = $region40
        $region39: #{tpu_custom_call.1} parent=35 // pred_region
          %s226 = sand.u32 %s69, 1
          %s227 = scalar_lea.sflag [#allocation4], %s226
          %s228 = sand.u32 %s69, 1
          %s229 = smul.addr %s228, 32
          %s230 = scalar_lea.vmem [#allocation5], %s229
          %232 = dma.done %s227, 512
        $region40: #{tpu_custom_call.1} parent=35 // pred_fallthru
          _
      $region36: #{tpu_custom_call.1} parent=5 // pred_fallthru
        _
    $region6: #{tpu_custom_call.1} parent=1 // loop_footer
      %s17 = sadd.s32 1, %s13
    $region7: #{tpu_custom_call.1} parent=1 // loop_footer_branch
      %12 = sbr.rel target = $region3
    $region8: #{tpu_custom_call.1} parent=1 // loop_exit
      _
    %233 = vsyncpa [#allocation3], 1
    %s234 = scalar_lea.sflag [#allocation3], 1
    %235 = vsyncpa %s234, 1
    %236 = vsyncpa [#allocation4], 1
    %s237 = scalar_lea.sflag [#allocation4], 1
    %238 = vsyncpa %s237, 1

</llo_original>
